<compile_context>
chip_gen: v7x
topology: tpu7x:2x2x1
jax: 0.10.0
libtpu: 0.0.40
codegen_flags: <defaults>
</compile_context>

<pallas_src>
import functools
import math

import jax
import jax.numpy as jnp
from jax.experimental import pallas as pl
from jax.experimental.pallas import tpu as pltpu


_LANE = 128


def _sublane_pack(itemsize):
    # Row-tile granularity: 8 for 4-byte, 16 for 2-byte, 32 for 1-byte dtypes.
    return {4: 8, 2: 16, 1: 32}.get(itemsize, 8)


def _round_up(x, m):
    return ((x + m - 1) // m) * m


def _largest_tile(n, granule, limit):
    """Largest multiple of `granule` that divides n and is <= limit (n % granule == 0)."""
    best = granule
    d = granule
    lim = min(n, limit)
    while d <= lim:
        if n % d == 0:
            best = d
        d += granule
    return best


def _device_plan():
    """(block_budget_bytes, vmem_limit_bytes) tuned per TPU generation."""
    try:
        kind = jax.devices()[0].device_kind.lower()
    except Exception:
        kind = ""
    if "v7" in kind:
        # 64 MiB physical VMEM, 3.2 TB/s: size to the VMEM ceiling explicitly.
        return 5 * 1024 * 1024, 56 * 1024 * 1024
    if "v6" in kind:
        # 128 MiB physical: bigger blocks shave per-step overhead, no VMEM risk.
        return 8 * 1024 * 1024, 96 * 1024 * 1024
    if "v5" in kind and ("lite" in kind or "5e" in kind):
        # Purely HBM-bound at ~820 GB/s: 4 MiB blocks are already <4% overhead.
        return 4 * 1024 * 1024, 48 * 1024 * 1024
    # Unknown chip: conservative config that is legal everywhere (<=64 MiB VMEM).
    return 4 * 1024 * 1024, 48 * 1024 * 1024


def _choose_tiles(R, L, itemsize, F, budget):
    """Tile/partition plan. Returns
    (R_pad, L_pad, tile_r, tile_l, P, split_rows, n_row_p, n_lane_p)."""
    sub = _sublane_pack(itemsize)
    g_r = sub * F // math.gcd(sub, F)          # row granule = lcm(sublane pack, F)

    # ---- lane tile ----
    max_tl = max(_LANE, budget // (g_r * itemsize))
    if L % _LANE == 0:
        L_pad = L
        tile_l = _largest_tile(L, _LANE, max_tl)
    elif g_r * L * itemsize <= budget:
        L_pad = L
        tile_l = L                               # full-dim lane block: always legal
    else:
        L_pad = _round_up(L, _LANE)              # pad lanes (zero diffs -> no effect)
        tile_l = _largest_tile(L_pad, _LANE, max_tl)

    # ---- row tile (multiple of the weight period so every tile starts at k=0) ----
    row_budget = max(g_r, budget // (tile_l * itemsize))
    R_pad = _round_up(R, g_r)                    # pad rows (zero diffs -> no effect)
    tile_r = _largest_tile(R_pad, g_r, row_budget)

    n_row, n_lane = R_pad // tile_r, L_pad // tile_l

    # ---- 2-way partition (megacore).  Never idle a core just because n_row is odd:
    # fall back to splitting lane tiles.
    if n_row % 2 == 0:
        P, split_rows, n_row_p, n_lane_p = 2, True, n_row // 2, n_lane
    elif n_lane % 2 == 0:
        P, split_rows, n_row_p, n_lane_p = 2, False, n_row, n_lane // 2
    else:
        P, split_rows, n_row_p, n_lane_p = 1, True, n_row, n_lane
    return R_pad, L_pad, tile_r, tile_l, P, split_rows, n_row_p, n_lane_p


@functools.partial(
    jax.jit, static_argnames=("forecast", "alpha", "block_bytes", "vmem_limit")
)
def fld_loss(pred, target, *, forecast=8, alpha=0.9, block_bytes=None, vmem_limit=None):
    """Pallas implementation of FLDLoss.forward(pred, target)."""
    B, F, H, W = pred.shape
    assert F == forecast, "channel dim must equal `forecast`"
    assert target.shape == pred.shape

    budget, limit = _device_plan()
    if block_bytes is not None:
        budget = block_bytes
    if vmem_limit is not None:
        limit = vmem_limit

    R, L = B * F, H * W
    itemsize = jnp.dtype(pred.dtype).itemsize

    (R_pad, L_pad, tile_r, tile_l, P, split_rows,
     n_row_p, n_lane_p) = _choose_tiles(R, L, itemsize, F, budget)

    pred2d = pred.reshape(R, L)                  # native dtype over HBM
    target2d = target.reshape(R, L)
    if (R_pad, L_pad) != (R, L):
        pad = ((0, R_pad - R), (0, L_pad - L))
        pred2d = jnp.pad(pred2d, pad)            # both padded with 0 -> diff 0
        target2d = jnp.pad(target2d, pad)

    log_alpha = math.log(alpha) if alpha > 0.0 else 0.0

    def kernel(p_ref, t_ref, o_ref):
        r_idx = pl.program_id(1)
        l_idx = pl.program_id(2)

        # First grid step of this partition: zero its SMEM accumulator.
        @pl.when(jnp.logical_and(r_idx == 0, l_idx == 0))
        def _init():
            o_ref[0, 0] = jnp.float32(0.0)

        d = p_ref[...].astype(jnp.float32) - t_ref[...].astype(jnp.float32)
        # Lane reduction first; weight applied on the (tile_r, 1) row sums.
        row_ss = jnp.sum(d * d, axis=-1, keepdims=True)

        # w[i] = alpha ** (i % F).  tile_r % F == 0 and every row block starts
        # on a weight-period boundary, so only the local row index matters.
        # i // F is computed with an exactness-safe float floor
        # (i <= tile_r << 2^23, and the +0.5 centers i/F away from integers).
        i_f = jax.lax.broadcasted_iota(jnp.int32, (tile_r, 1), 0).astype(jnp.float32)
        q = jnp.floor((i_f + 0.5) * jnp.float32(1.0 / F))
        k_f = i_f - q * jnp.float32(F)           # exact small-integer float
        if alpha > 0.0:
            w_blk = jnp.exp(k_f * jnp.float32(log_alpha))    # EUP, ~free slot
        else:  # degenerate alpha <= 0: exact unrolled select over the F residues
            w_blk = jnp.zeros((tile_r, 1), jnp.float32)
            for kk in range(F):
                w_blk = jnp.where(k_f == jnp.float32(kk),
                                  jnp.float32(alpha ** kk), w_blk)

        o_ref[0, 0] += jnp.sum(row_ss * w_blk)

    if split_rows:
        in_map = lambda p, r, l: (p * n_row_p + r, l)
    else:
        in_map = lambda p, r, l: (r, p * n_lane_p + l)

    n_elem_pad = R_pad * L_pad
    cost = pl.CostEstimate(
        flops=3 * n_elem_pad + 8 * R_pad,        # sub + mul + reduce-add per elem
        transcendentals=R_pad,
        bytes_accessed=2 * n_elem_pad * itemsize + P * 4,
    )

    partials = pl.pallas_call(
        kernel,
        out_shape=jax.ShapeDtypeStruct((P, 1), jnp.float32),
        grid_spec=pltpu.PrefetchScalarGridSpec(
            num_scalar_prefetch=0,
            grid=(P, n_row_p, n_lane_p),
            in_specs=[
                pl.BlockSpec((tile_r, tile_l), in_map),
                pl.BlockSpec((tile_r, tile_l), in_map),
            ],
            out_specs=pl.BlockSpec(
                (1, 1), lambda p, r, l: (p, 0), memory_space=pltpu.SMEM
            ),
        ),
        compiler_params=pltpu.CompilerParams(
            # TODO(synk): on v7x, confirm in the trace that the leading axis is
            # actually sharded across both TensorCores; if not, switch it to
            # pltpu.CORE_PARALLEL (or pl.core_map) for the 2-TC split.
            dimension_semantics=("parallel", "arbitrary", "arbitrary"),
            vmem_limit_bytes=limit,
        ),
        cost_estimate=cost,
    )(pred2d, target2d)

    return jnp.sum(partials) / jnp.float32(B * F * H * W)


def fld_loss_ref(pred, target, *, forecast=8, alpha=0.9):
    """Pure-JAX reference mirroring the PyTorch module (f32 accumulation)."""
    w = (alpha ** jnp.arange(forecast, dtype=jnp.float32)).reshape(1, -1, 1, 1)
    p = pred.astype(jnp.float32)
    t = target.astype(jnp.float32)
    return jnp.mean((p - t) ** 2 * w)


if __name__ == "__main__":
    root = jax.random.PRNGKey(0)

    cases = [
        # (shape, dtype, forecast, alpha, block_bytes, rtol)
        ((2, 8, 16, 16), jnp.float32, 8, 0.9, None, 2e-5),        # single block
        ((4, 8, 32, 128), jnp.float32, 8, 0.9, 64 * 1024, 2e-5),  # grid (2,2,2), row-split partition
        ((2, 8, 64, 64), jnp.bfloat16, 8, 0.9, 64 * 1024, 1e-3),  # bf16 stream, lane-split partition
        ((2, 5, 9, 13), jnp.float32, 5, 0.8, None, 2e-5),         # ragged shape -> zero padding path
    ]

    for idx, (shape, dtype, fc, al, bb, rtol) in enumerate(cases):
        k1, k2 = jax.random.split(jax.random.fold_in(root, idx))
        pred = jax.random.normal(k1, shape, dtype=jnp.float32).astype(dtype)
        target = jax.random.normal(k2, shape, dtype=jnp.float32).astype(dtype)

        out = fld_loss(pred, target, forecast=fc, alpha=al, block_bytes=bb)
        jax.block_until_ready(out)

        ref = fld_loss_ref(pred, target, forecast=fc, alpha=al)
        assert jnp.allclose(out, ref, rtol=rtol, atol=1e-6), (
            shape, str(dtype), float(out), float(ref))

    print("KERNEL_OK")
</pallas_src>

<mosaic_0001>
module attributes {stable_mosaic.version = 11 : i64} {
  func.func @kernel(%arg0: i32, %arg1: i32, %arg2: i32, %arg3: memref<16x256xf32, #tpu.memory_space<vmem>>, %arg4: memref<16x256xf32, #tpu.memory_space<vmem>>, %arg5: memref<1x1xf32, #tpu.memory_space<smem>>) attributes {dimension_semantics = [#tpu.dimension_semantics<parallel>, #tpu.dimension_semantics<arbitrary>, #tpu.dimension_semantics<arbitrary>], iteration_bounds = array<i64: 1, 1, 1>, scalar_prefetch = 0 : i64, scratch_operands = 0 : i64, tpu.core_type = #tpu.core_type<tc>, window_params = [{transform_indices = @transform_0, window_bounds = array<i64: 16, 256>}, {transform_indices = @transform_1, window_bounds = array<i64: 16, 256>}, {transform_indices = @transform_2, window_bounds = array<i64: 1, 1>}]} {
    %c0_i32 = arith.constant 0 : i32
    %0 = arith.cmpi eq, %arg1, %c0_i32 : i32
    %c0_i32_0 = arith.constant 0 : i32
    %1 = arith.cmpi eq, %arg2, %c0_i32_0 : i32
    %2 = arith.andi %0, %1 : i1
    %3 = arith.extui %2 : i1 to i32
    %c0_i32_1 = arith.constant 0 : i32
    %4 = arith.cmpi ne, %3, %c0_i32_1 : i32
    scf.if %4 {
      %cst_14 = arith.constant 0.000000e+00 : f32
      %c0_15 = arith.constant 0 : index
      %c0_16 = arith.constant 0 : index
      %32 = memref.load %arg5[%c0_15, %c0_16] : memref<1x1xf32, #tpu.memory_space<smem>>
      memref.store %cst_14, %arg5[%c0_15, %c0_16] : memref<1x1xf32, #tpu.memory_space<smem>>
    } else {
    }
    %c0 = arith.constant 0 : index
    %c0_2 = arith.constant 0 : index
    %5 = vector.load %arg3[%c0, %c0_2] : memref<16x256xf32, #tpu.memory_space<vmem>>, vector<16x256xf32>
    %c0_3 = arith.constant 0 : index
    %c0_4 = arith.constant 0 : index
    %6 = vector.load %arg4[%c0_3, %c0_4] : memref<16x256xf32, #tpu.memory_space<vmem>>, vector<16x256xf32>
    %7 = arith.subf %5, %6 : vector<16x256xf32>
    %8 = arith.mulf %7, %7 : vector<16x256xf32>
    %cst = arith.constant dense<0.000000e+00> : vector<16xf32>
    %9 = vector.multi_reduction <add>, %8, %cst [1] : vector<16x256xf32> to vector<16xf32>
    %10 = vector.shape_cast %9 : vector<16xf32> to vector<16x1xf32>
    %11 = tpu.iota {dimensions = array<i32: 0>} : vector<16x1xi32>
    %12 = arith.sitofp %11 : vector<16x1xi32> to vector<16x1xf32>
    %cst_5 = arith.constant 5.000000e-01 : f32
    %13 = vector.broadcast %cst_5 : f32 to vector<16x1xf32>
    %14 = arith.addf %12, %13 : vector<16x1xf32>
    %cst_6 = arith.constant 1.250000e-01 : f32
    %15 = vector.broadcast %cst_6 : f32 to vector<16x1xf32>
    %16 = arith.mulf %14, %15 : vector<16x1xf32>
    %17 = math.floor %16 : vector<16x1xf32>
    %cst_7 = arith.constant 8.000000e+00 : f32
    %18 = vector.broadcast %cst_7 : f32 to vector<16x1xf32>
    %19 = arith.mulf %17, %18 : vector<16x1xf32>
    %20 = arith.subf %12, %19 : vector<16x1xf32>
    %cst_8 = arith.constant -0.105360515 : f32
    %21 = vector.broadcast %cst_8 : f32 to vector<16x1xf32>
    %22 = arith.mulf %20, %21 : vector<16x1xf32>
    %23 = math.exp %22 : vector<16x1xf32>
    %c0_9 = arith.constant 0 : index
    %c0_10 = arith.constant 0 : index
    %24 = memref.load %arg5[%c0_9, %c0_10] : memref<1x1xf32, #tpu.memory_space<smem>>
    %25 = arith.mulf %10, %23 : vector<16x1xf32>
    %26 = vector.shape_cast %25 : vector<16x1xf32> to vector<1x16x1xf32>
    %cst_11 = arith.constant dense<0.000000e+00> : vector<1xf32>
    %27 = vector.multi_reduction <add>, %26, %cst_11 [1, 2] : vector<1x16x1xf32> to vector<1xf32>
    %28 = vector.shape_cast %27 : vector<1xf32> to vector<1x1x1xf32>
    %29 = vector.extract %28[0, 0, 0] : f32 from vector<1x1x1xf32>
    %30 = arith.addf %24, %29 : f32
    %c0_12 = arith.constant 0 : index
    %c0_13 = arith.constant 0 : index
    %31 = memref.load %arg5[%c0_12, %c0_13] : memref<1x1xf32, #tpu.memory_space<smem>>
    memref.store %30, %arg5[%c0_12, %c0_13] : memref<1x1xf32, #tpu.memory_space<smem>>
    return
  }
  func.func @transform_0(%arg0: i32, %arg1: i32, %arg2: i32) -> (i32, i32) {
    %c1_i32 = arith.constant 1 : i32
    %0 = arith.muli %arg0, %c1_i32 : i32
    %1 = arith.addi %0, %arg1 : i32
    %c0_i32 = arith.constant 0 : i32
    return %1, %arg2 : i32, i32
  }
  func.func @transform_1(%arg0: i32, %arg1: i32, %arg2: i32) -> (i32, i32) {
    %c1_i32 = arith.constant 1 : i32
    %0 = arith.muli %arg0, %c1_i32 : i32
    %1 = arith.addi %0, %arg1 : i32
    %c0_i32 = arith.constant 0 : i32
    return %1, %arg2 : i32, i32
  }
  func.func @transform_2(%arg0: i32, %arg1: i32, %arg2: i32) -> (i32, i32) {
    %c0_i32 = arith.constant 0 : i32
    %c0_i32_0 = arith.constant 0 : i32
    return %arg0, %c0_i32 : i32, i32
  }
}

</mosaic_0001>

<llo_original>
// kernel: fld_loss.1
$region0: #{fld_loss.1}
  #allocation0 [shape = 'u32[]', space=smem, size = 0x4, offset = 0x4, fixed_abs, tag = 'smem constant byte address 0x4 - core index']
  #allocation1 [shape = 'u32[144,128]{1,0:T(1,128)}', space=vmem, size = 0x12000, scoped, tag = 'internal scratch']
  %s0 = inlined_call_operand.vmem [shape: f32[16,256], index: 0, kind: input, shape index: {}]
  %s1 = inlined_call_operand.vmem [shape: f32[16,256], index: 1, kind: input, shape index: {}]
  %s2 = inlined_call_operand.hbm [shape: f32[1,1], index: 2, kind: output, shape index: {}]
  %s3 = sld [smem:[#allocation0]]
  $region22: #{fld_loss.1} parent=0
    _
  %s5 = ssub.s32 1, %s3
  %s6 = scalar_select 0, %s5, %s3
  $region1: #{fld_loss.1} parent=0
    #allocation2 [shape = 'u8[512]{0}', space=smem, size = 0x200, scoped, tag = 'output window, operand 0, single buffered']
    #allocation3 [shape = 's32[1]{0}', space=sflag, size = 0x4, scoped, tag = 'scoped memory for fld_loss.1']
    %7 = vsyncpa [#allocation3], 0
    // Predicated region
    $region2: #{fld_loss.1} parent=1 // pred_check
      _
    $region3: #{fld_loss.1} parent=1 // pred_check_branch
      %9 = sbr.rel (0) target = $region5
    $region4: #{fld_loss.1} parent=1 // pred_region
      %s10 = sadd.s32 0, 0
      %s11 = smul.u32 2, %s10
      %p12 = scmp.lt.s32.totalorder %s11, 1
      %s13 = scalar_select %p12, %s11, 1
      %s14 = smul.addr %s13, 2
      %s15 = smul.addr %s14, 8
      %s16 = scalar_lea.vmem %s0, %s15
      %s17 = sadd.s32 0, 0
      %s18 = smul.u32 2, %s17
    $region5: #{fld_loss.1} parent=1 // pred_fallthru
      _
    // Predicated region
    $region6: #{fld_loss.1} parent=1 // pred_check
      _
    $region7: #{fld_loss.1} parent=1 // pred_check_branch
      %20 = sbr.rel (0) target = $region9
    $region8: #{fld_loss.1} parent=1 // pred_region
      %s21 = sadd.s32 0, 0
      %s22 = smul.u32 2, %s21
      %p23 = scmp.lt.s32.totalorder %s22, 1
      %s24 = scalar_select %p23, %s22, 1
      %s25 = smul.addr %s24, 2
      %s26 = smul.addr %s25, 8
      %s27 = scalar_lea.vmem %s1, %s26
      %s28 = sadd.s32 0, 0
      %s29 = smul.u32 2, %s28
    $region9: #{fld_loss.1} parent=1 // pred_fallthru
      _
    %s30 = sadd.s32 0, 0
    %s31 = smul.u32 2, %s30
    %p32 = scmp.lt.s32.totalorder %s31, 1
    %s33 = scalar_select %p32, %s31, 1
    %s34 = smul.addr %s33, 2
    %s35 = smul.addr %s34, 8
    %s36 = scalar_lea.vmem %s0, %s35
    %s37 = sadd.s32 0, 0
    %s38 = smul.u32 2, %s37
    %p39 = scmp.lt.s32.totalorder %s38, 1
    %s40 = scalar_select %p39, %s38, 1
    %s41 = smul.addr %s40, 2
    %s42 = smul.addr %s41, 8
    %s43 = scalar_lea.vmem %s1, %s42
    %s44 = sadd.s32 0, 0
    %s45 = smul.u32 2, %s44
    %p46 = scmp.lt.s32.totalorder %s45, 1
    %s47 = scalar_select %p46, %s45, 1
    %s48 = smul.addr %s47, 2
    %s49 = smul.addr %s48, 8
    %s50 = scalar_lea.vmem %s0, %s49
    %s51 = sadd.s32 0, 0
    %s52 = smul.u32 2, %s51
    %s53 = sadd.s32 0, 0
    %s54 = smul.u32 2, %s53
    %p55 = scmp.lt.s32.totalorder %s54, 1
    %s56 = scalar_select %p55, %s54, 1
    %s57 = smul.addr %s56, 2
    %s58 = smul.addr %s57, 8
    %s59 = scalar_lea.vmem %s1, %s58
    %s60 = sadd.s32 0, 0
    %s61 = smul.u32 2, %s60
    %p62 = scmp.eq.s32.totalorder 0, 0
    %p63 = scmp.eq.s32.totalorder 0, 0
    %p64 = pnand %p62, %p63
    %p65 = pneg %p64
    // Predicated region
    $region10: #{fld_loss.1} parent=1 // pred_check
      _
    $region11: #{fld_loss.1} parent=1 // pred_check_branch
      %67 = sbr.rel (%p64) target = $region13
    $region12: #{fld_loss.1} parent=1 // pred_region
      %s68 = scalar_lea.smem [#allocation2], 0
      %69 = sst [smem:[%s68]] 0.0
    $region13: #{fld_loss.1} parent=1 // pred_fallthru
      _
    %v70 = vld [vmem:[%s50] sm:$0xff]
    %v71 = vld [vmem:[%s50 + $0x8] sm:$0xff]
    %v72 = vld [vmem:[%s50 + $0x10] sm:$0xff]
    %v73 = vld [vmem:[%s50 + $0x18] sm:$0xff]
    %v74 = vld [vmem:[%s59] sm:$0xff]
    %v75 = vld [vmem:[%s59 + $0x8] sm:$0xff]
    %v76 = vld [vmem:[%s59 + $0x10] sm:$0xff]
    %v77 = vld [vmem:[%s59 + $0x18] sm:$0xff]
    %v78 = vsub.f32 %v70, %v74
    %v79 = vsub.f32 %v71, %v75
    %v80 = vsub.f32 %v72, %v76
    %v81 = vsub.f32 %v73, %v77
    %v82 = vmul.f32 %v78, %v78
    %v83 = vmul.f32 %v79, %v79
    %v84 = vmul.f32 %v80, %v80
    %v85 = vmul.f32 %v81, %v81
    %v86 = vadd.f32 %v82, %v83
    %87 = vadd.xlane.f32.xlu0 %v86
    %v88 = vpop.xlane.xlu0 %87
    %v89 = vadd.f32 %v84, %v85
    %90 = vadd.xlane.f32.xlu0 %v89
    %v91 = vpop.xlane.xlu0 %90
    %v92 = vlaneseq
    %v93 = vshrl.u32 %v92, 7
    %v94 = vadd.s32 %v93, 8
    %v95 = vcvt.s32.f32 %v93
    %v96 = vcvt.s32.f32 %v94
    %v97 = vadd.f32 %v95, 0.5
    %v98 = vadd.f32 %v96, 0.5
    %v99 = vmul.f32 %v97, 0.125
    %v100 = vmul.f32 %v98, 0.125
    %v101 = vfloor.f32 %v99
    %v102 = vfloor.f32 %v100
    %v103 = vmul.f32 %v101, 8.0
    %v104 = vmul.f32 %v102, 8.0
    %v105 = vsub.f32 %v95, %v103
    %v106 = vsub.f32 %v96, %v104
    %v107 = vmul.f32 %v105, -0.105360515
    %v108 = vmul.f32 %v106, -0.105360515
    %v109 = vmul.f32 %v107, 1.442695
    %v110 = vpow.pop %v109
    %v111 = vmul.f32 %v108, 1.442695
    %v112 = vpow.pop %v111
    %s113 = sld [smem:[#allocation2]]
    %v114 = vmul.f32 %v88, %v110
    %v115 = vmul.f32 %v91, %v112
    %vm116 = vcmask 7168
    %v117 = vsel %vm116, %v114, 0.0
    %v118 = vsel %vm116, %v115, 0.0
    %v119 = vadd.f32 %v117, %v118
    %120 = vadd.xlane.f32.xlu0 %v119
    %v121 = vpop.xlane.xlu0 %120
    %v122 = vrot.slane %v121, 4
    %v123 = vadd.f32 %v121, %v122
    %v124 = vrot.slane %v123, 2
    %v125 = vadd.f32 %v123, %v124
    %v126 = vrot.slane %v125, 1
    %v127 = vadd.f32 %v125, %v126
    %s128 = vtos %v127
    %s129 = sadd.f32 %s113, %s128
    %s130 = scalar_lea.smem [#allocation2], 0
    %131 = sst [smem:[%s130]] %s129
    // Predicated region
    $region14: #{fld_loss.1} parent=1 // pred_check
      _
    $region15: #{fld_loss.1} parent=1 // pred_check_branch
      %133 = sbr.rel (0) target = $region17
    $region16: #{fld_loss.1} parent=1 // pred_region
      %s135 = ssub.s32 16, 16
      %136 = vsyncadd [#allocation3], %s135
      %139 = dma.smem_to_hbm [#allocation2], 16, %s2, [#allocation3]
    $region17: #{fld_loss.1} parent=1 // pred_fallthru
      _
    // Predicated region
    $region18: #{fld_loss.1} parent=1 // pred_check
      _
    $region19: #{fld_loss.1} parent=1 // pred_check_branch
      %141 = sbr.rel (0) target = $region21
    $region20: #{fld_loss.1} parent=1 // pred_region
      %142 = dma.done [#allocation3], 16
    $region21: #{fld_loss.1} parent=1 // pred_fallthru
      _
    %143 = sfence
    %144 = vsyncpa [#allocation3], 1

</llo_original>
